<compile_context>
chip_gen: v5e
topology: v5e:2x2
jax: 0.10.0
libtpu: 0.0.40
codegen_flags: <defaults>
</compile_context>

<pallas_src>
import functools

import jax
import jax.numpy as jnp
from jax.experimental import pallas as pl
from jax.experimental.pallas import tpu as pltpu


def _round_up(n, m):
    return ((n + m - 1) // m) * m


def _cdiv(a, b):
    return -(-a // b)


def _residual_block_kernel(x_ref, w1_ref, b1_ref, w2_ref, b2_ref, o_ref,
                           *scratch, feat_pad):
    """Fused: h = tanh(x @ W1 + b1); o = tanh(h @ W2 + b2 + x).

    MXU operands in the weight dtype (bf16); accumulation, bias, residual and
    tanh in float32.  If the feature dim is not a multiple of 128 lanes, x is
    zero-padded to Hp inside VMEM (padding is mathematically inert).
    """
    mm_dtype = w1_ref.dtype

    if feat_pad:
        (xpad_ref,) = scratch
        # Re-zero every grid step: scratch persists across steps and is
        # per-core, and with a "parallel" grid axis step 0 may only run on
        # one TensorCore -- so no step-0-only init.
        xpad_ref[...] = jnp.zeros_like(xpad_ref)
        xpad_ref[:, : x_ref.shape[1]] = x_ref[...]
        x = xpad_ref[...]                            # (tb, Hp) float32
    else:
        x = x_ref[...]                               # (tb, Hp) float32

    h = jnp.dot(x.astype(mm_dtype), w1_ref[...],
                preferred_element_type=jnp.float32)
    h = jnp.tanh(h + b1_ref[...])                    # (tb, Hp) + (1, Hp)

    y = jnp.dot(h.astype(mm_dtype), w2_ref[...],
                preferred_element_type=jnp.float32)
    y = y + b2_ref[...] + x                          # residual in exact f32

    o_ref[...] = jnp.tanh(y).astype(o_ref.dtype)


def prepare_params(w1, b1, w2, b2, mm_dtype=jnp.bfloat16):
    """One-time prep: transpose PyTorch (out,in) weights to (in,out), zero-pad
    feature dims to a multiple of 128 lanes, cast weights to the MXU dtype and
    biases to (1, Hp) float32.  Zero padding is inert: padded h columns are
    tanh(0) = 0 and multiply zero W2 rows; padded output columns are sliced
    off by the wrapper."""
    H = w1.shape[0]
    Hp = _round_up(H, 128)
    p = Hp - H
    w1_t = jnp.pad(jnp.asarray(w1).T, ((0, p), (0, p))).astype(mm_dtype)
    w2_t = jnp.pad(jnp.asarray(w2).T, ((0, p), (0, p))).astype(mm_dtype)
    b1_p = jnp.pad(jnp.asarray(b1, jnp.float32), (0, p)).reshape(1, Hp)
    b2_p = jnp.pad(jnp.asarray(b2, jnp.float32), (0, p)).reshape(1, Hp)
    return w1_t, b1_p, w2_t, b2_p


def _vmem_capacity_bytes():
    try:
        return int(pltpu.get_tpu_info().vmem_capacity_bytes)
    except Exception:
        return 64 << 20  # conservative: v7x per-TensorCore VMEM


@functools.partial(jax.jit, static_argnames=("block_b",))
def residual_block(x, w1_t, b1, w2_t, b2, *, block_b=512):
    """x: (B, H) float32.  w*_t: (Hp, Hp) padded, pre-transposed (bf16).
    b*: (1, Hp) float32.  Returns (B, H) float32.

    Note: both matmul operands run on the MXU in bf16 (f32 accumulation), so
    expect ~1e-2-level deviation vs a pure-f32 reference."""
    B, H = x.shape
    Hp = w1_t.shape[0]
    feat_pad = Hp - H
    mm_bytes = int(jnp.dtype(w1_t.dtype).itemsize)

    vmem_budget = _vmem_capacity_bytes() - (8 << 20)  # compiler headroom

    def vmem_estimate(tb):
        weights = 2 * Hp * Hp * mm_bytes + 2 * Hp * 4     # single-buffered
        stream = 2 * tb * H * 4 + 2 * tb * Hp * 4         # x in + out, 2-deep
        scratch = (tb * Hp * 4 if feat_pad else 0) + 4 * tb * Hp * 4
        return int(1.25 * (weights + stream + scratch)) + (2 << 20)

    # Batch tile: big enough to amortize per-step overhead and approach the
    # HBM roofline in the memory-bound (small/medium H) regime; >= 2 grid
    # steps when B > 8 so the "parallel" axis shards across v7x's 2 cores;
    # shrink if the VMEM estimate exceeds the chip's capacity.
    tb = min(block_b, _round_up(B, 8))
    if B > 8:
        tb = min(tb, _round_up(_cdiv(B, 2), 8))
    tb = max(tb, 8)
    while tb > 8 and vmem_estimate(tb) > vmem_budget:
        tb = max(8, _round_up(tb // 2, 8))

    vmem_limit = int(min(max(vmem_estimate(tb), 16 << 20), vmem_budget))

    grid = (_cdiv(B, tb),)  # partial last block: OOB rows are masked on store

    out_w = Hp if feat_pad else H
    kernel = functools.partial(_residual_block_kernel, feat_pad=feat_pad)
    scratch_shapes = [pltpu.VMEM((tb, Hp), jnp.float32)] if feat_pad else []

    cost = pl.CostEstimate(
        flops=4 * B * Hp * Hp,                 # two (B,Hp)x(Hp,Hp) matmuls
        transcendentals=2 * B * Hp,            # two tanh passes
        bytes_accessed=int(B * H * 4 + B * out_w * 4
                           + 2 * Hp * Hp * mm_bytes + 2 * Hp * 4),
    )

    resident = pl.Buffered(1)  # grid-invariant operands: no double buffering

    out = pl.pallas_call(
        kernel,
        out_shape=jax.ShapeDtypeStruct((B, out_w), jnp.float32),
        grid_spec=pltpu.PrefetchScalarGridSpec(
            num_scalar_prefetch=0,
            grid=grid,
            in_specs=[
                # activation tile: one batch block per grid step (streamed)
                pl.BlockSpec((tb, H), lambda i: (i, 0)),
                # weights / biases: same block every step (stay resident)
                pl.BlockSpec((Hp, Hp), lambda i: (0, 0), pipeline_mode=resident),
                pl.BlockSpec((1, Hp), lambda i: (0, 0), pipeline_mode=resident),
                pl.BlockSpec((Hp, Hp), lambda i: (0, 0), pipeline_mode=resident),
                pl.BlockSpec((1, Hp), lambda i: (0, 0), pipeline_mode=resident),
            ],
            out_specs=pl.BlockSpec((tb, out_w), lambda i: (i, 0)),
            scratch_shapes=scratch_shapes,
        ),
        compiler_params=pltpu.CompilerParams(
            dimension_semantics=("parallel",),
            vmem_limit_bytes=vmem_limit,
        ),
        cost_estimate=cost,
    )(x, w1_t, b1, w2_t, b2)

    if feat_pad:
        out = out[:, :H]
    return out


def init_params(key, input_size, dtype=jnp.float32):
    """Deterministic init mimicking nn.Linear's uniform(-1/sqrt(fan_in), ...)."""
    k1, k2, k3, k4 = jax.random.split(key, 4)
    bound = 1.0 / jnp.sqrt(jnp.float32(input_size))
    # PyTorch layout (out, in); transposed/padded in prepare_params.
    w1 = jax.random.uniform(k1, (input_size, input_size), dtype, -bound, bound)
    b1 = jax.random.uniform(k2, (input_size,), dtype, -bound, bound)
    w2 = jax.random.uniform(k3, (input_size, input_size), dtype, -bound, bound)
    b2 = jax.random.uniform(k4, (input_size,), dtype, -bound, bound)
    return w1, b1, w2, b2


def reference_forward(x, w1, b1, w2, b2):
    """Pure-JAX f32 replica of the PyTorch forward (weights in (out,in) layout)."""
    out = jnp.tanh(x @ w1.T + b1)
    out = out @ w2.T + b2
    out = out + x
    return jnp.tanh(out)


if __name__ == "__main__":
    B, H = 16, 32  # small shapes consistent with nn.Linear(input_size, input_size)

    key = jax.random.PRNGKey(0)
    kx, kp = jax.random.split(key)
    x = jax.random.normal(kx, (B, H), jnp.float32)
    w1, b1, w2, b2 = init_params(kp, H)

    # One-time weight prep: transpose -> pad to 128 lanes -> cast to bf16.
    w1_t, b1_p, w2_t, b2_p = prepare_params(w1, b1, w2, b2)

    y = residual_block(x, w1_t, b1_p, w2_t, b2_p)
    y = jax.block_until_ready(y)

    y_ref = reference_forward(x, w1, b1, w2, b2)
    assert y.shape == (B, H)
    # bf16 MXU operands -> loosened tolerance vs the pure-f32 reference.
    max_err = float(jnp.max(jnp.abs(y - y_ref)))
    assert jnp.allclose(y, y_ref, atol=5e-2, rtol=5e-2), (
        f"mismatch vs reference, max abs err {max_err}")

    print("KERNEL_OK")
</pallas_src>

<mosaic_0001>
module attributes {stable_mosaic.version = 11 : i64} {
  func.func @_residual_block_kernel(%arg0: i32, %arg1: memref<8x32xf32, #tpu.memory_space<vmem>>, %arg2: memref<128x128xbf16, #tpu.memory_space<vmem>>, %arg3: memref<1x128xf32, #tpu.memory_space<vmem>>, %arg4: memref<128x128xbf16, #tpu.memory_space<vmem>>, %arg5: memref<1x128xf32, #tpu.memory_space<vmem>>, %arg6: memref<8x128xf32, #tpu.memory_space<vmem>>, %arg7: memref<8x128xf32, #tpu.memory_space<vmem>>) attributes {dimension_semantics = [#tpu.dimension_semantics<parallel>], iteration_bounds = array<i64: 2>, scalar_prefetch = 0 : i64, scratch_operands = 1 : i64, tpu.core_type = #tpu.core_type<tc>, window_params = [{transform_indices = @transform_0, window_bounds = array<i64: 8, 32>}, {pipeline_mode = #tpu.pipeline_mode<synchronous>, transform_indices = @transform_1, window_bounds = array<i64: 128, 128>}, {pipeline_mode = #tpu.pipeline_mode<synchronous>, transform_indices = @transform_2, window_bounds = array<i64: 1, 128>}, {pipeline_mode = #tpu.pipeline_mode<synchronous>, transform_indices = @transform_3, window_bounds = array<i64: 128, 128>}, {pipeline_mode = #tpu.pipeline_mode<synchronous>, transform_indices = @transform_4, window_bounds = array<i64: 1, 128>}, {transform_indices = @transform_5, window_bounds = array<i64: 8, 128>}]} {
    %cst = arith.constant 0.000000e+00 : f32
    %0 = vector.broadcast %cst : f32 to vector<8x128xf32>
    %c0 = arith.constant 0 : index
    %c0_0 = arith.constant 0 : index
    %1 = vector.load %arg7[%c0, %c0_0] : memref<8x128xf32, #tpu.memory_space<vmem>>, vector<8x128xf32>
    tpu.vector_store %arg7[%c0, %c0_0], %0 {strides = array<i32>} : memref<8x128xf32, #tpu.memory_space<vmem>>, vector<8x128xf32>,
    %c0_1 = arith.constant 0 : index
    %c0_2 = arith.constant 0 : index
    %2 = vector.load %arg1[%c0_1, %c0_2] : memref<8x32xf32, #tpu.memory_space<vmem>>, vector<8x32xf32>
    %c0_3 = arith.constant 0 : index
    %c0_4 = arith.constant 0 : index
    %3 = vector.load %arg7[%c0_3, %c0_4] : memref<8x128xf32, #tpu.memory_space<vmem>>, vector<8x32xf32>
    tpu.vector_store %arg7[%c0_3, %c0_4], %2 {strides = array<i32>} : memref<8x128xf32, #tpu.memory_space<vmem>>, vector<8x32xf32>,
    %c0_5 = arith.constant 0 : index
    %c0_6 = arith.constant 0 : index
    %4 = vector.load %arg7[%c0_5, %c0_6] : memref<8x128xf32, #tpu.memory_space<vmem>>, vector<8x128xf32>
    %5 = arith.truncf %4 : vector<8x128xf32> to vector<8x128xbf16>
    %c0_7 = arith.constant 0 : index
    %c0_8 = arith.constant 0 : index
    %6 = vector.load %arg2[%c0_7, %c0_8] : memref<128x128xbf16, #tpu.memory_space<vmem>>, vector<128x128xbf16>
    %cst_9 = arith.constant dense<0.000000e+00> : vector<8x128xf32>
    %7 = tpu.matmul %5, %6, %cst_9 {dimension_numbers = #tpu.dot_dimension_numbers<[1], [0], [0], [1], [0, 0, 1, 1], [], []>} : vector<8x128xbf16>, vector<128x128xbf16>, vector<8x128xf32> -> vector<8x128xf32>
    %c0_10 = arith.constant 0 : index
    %c0_11 = arith.constant 0 : index
    %8 = vector.load %arg3[%c0_10, %c0_11] : memref<1x128xf32, #tpu.memory_space<vmem>>, vector<1x128xf32>
    %9 = vector.broadcast %8 : vector<1x128xf32> to vector<8x128xf32>
    %10 = arith.addf %7, %9 : vector<8x128xf32>
    %11 = math.tanh %10 : vector<8x128xf32>
    %12 = arith.truncf %11 : vector<8x128xf32> to vector<8x128xbf16>
    %c0_12 = arith.constant 0 : index
    %c0_13 = arith.constant 0 : index
    %13 = vector.load %arg4[%c0_12, %c0_13] : memref<128x128xbf16, #tpu.memory_space<vmem>>, vector<128x128xbf16>
    %cst_14 = arith.constant dense<0.000000e+00> : vector<8x128xf32>
    %14 = tpu.matmul %12, %13, %cst_14 {dimension_numbers = #tpu.dot_dimension_numbers<[1], [0], [0], [1], [0, 0, 1, 1], [], []>} : vector<8x128xbf16>, vector<128x128xbf16>, vector<8x128xf32> -> vector<8x128xf32>
    %c0_15 = arith.constant 0 : index
    %c0_16 = arith.constant 0 : index
    %15 = vector.load %arg5[%c0_15, %c0_16] : memref<1x128xf32, #tpu.memory_space<vmem>>, vector<1x128xf32>
    %16 = vector.broadcast %15 : vector<1x128xf32> to vector<8x128xf32>
    %17 = arith.addf %14, %16 : vector<8x128xf32>
    %18 = arith.addf %17, %4 : vector<8x128xf32>
    %19 = math.tanh %18 : vector<8x128xf32>
    %c0_17 = arith.constant 0 : index
    %c0_18 = arith.constant 0 : index
    %20 = vector.load %arg6[%c0_17, %c0_18] : memref<8x128xf32, #tpu.memory_space<vmem>>, vector<8x128xf32>
    tpu.vector_store %arg6[%c0_17, %c0_18], %19 {strides = array<i32>} : memref<8x128xf32, #tpu.memory_space<vmem>>, vector<8x128xf32>,
    return
  }
  func.func @transform_0(%arg0: i32) -> (i32, i32) {
    %c0_i32 = arith.constant 0 : i32
    %c0_i32_0 = arith.constant 0 : i32
    return %arg0, %c0_i32 : i32, i32
  }
  func.func @transform_1(%arg0: i32) -> (i32, i32) {
    %c0_i32 = arith.constant 0 : i32
    %c0_i32_0 = arith.constant 0 : i32
    %c0_i32_1 = arith.constant 0 : i32
    return %c0_i32, %c0_i32_0 : i32, i32
  }
  func.func @transform_2(%arg0: i32) -> (i32, i32) {
    %c0_i32 = arith.constant 0 : i32
    %c0_i32_0 = arith.constant 0 : i32
    %c0_i32_1 = arith.constant 0 : i32
    return %c0_i32, %c0_i32_0 : i32, i32
  }
  func.func @transform_3(%arg0: i32) -> (i32, i32) {
    %c0_i32 = arith.constant 0 : i32
    %c0_i32_0 = arith.constant 0 : i32
    %c0_i32_1 = arith.constant 0 : i32
    return %c0_i32, %c0_i32_0 : i32, i32
  }
  func.func @transform_4(%arg0: i32) -> (i32, i32) {
    %c0_i32 = arith.constant 0 : i32
    %c0_i32_0 = arith.constant 0 : i32
    %c0_i32_1 = arith.constant 0 : i32
    return %c0_i32, %c0_i32_0 : i32, i32
  }
  func.func @transform_5(%arg0: i32) -> (i32, i32) {
    %c0_i32 = arith.constant 0 : i32
    %c0_i32_0 = arith.constant 0 : i32
    return %arg0, %c0_i32 : i32, i32
  }
}

</mosaic_0001>

<llo_original>
// kernel: residual_block.1
$region0: #{residual_block.1}
  #allocation0 [shape = 'u32[]', space=smem, size = 0x4, offset = 0x4, fixed_abs, tag = 'smem constant byte address 0x4 - core index']
  #allocation1 [shape = 'u32[72,128]{1,0:T(1,128)}', space=vmem, size = 0x9000, scoped, tag = 'internal scratch']
  #allocation2 [shape = 'f32[8,128]{1,0:T(8,128)}', space=vmem, size = 0x1000, scoped, tag = 'scratch operand']
  %s0 = inlined_call_operand.hbm [shape: f32[16,32], index: 0, kind: input, shape index: {}]
  %s1 = inlined_call_operand.hbm [shape: bf16[128,128], index: 1, kind: input, shape index: {}]
  %s2 = inlined_call_operand.vmem [shape: f32[1,128], index: 2, kind: input, shape index: {}]
  %s3 = inlined_call_operand.hbm [shape: bf16[128,128], index: 3, kind: input, shape index: {}]
  %s4 = inlined_call_operand.vmem [shape: f32[1,128], index: 4, kind: input, shape index: {}]
  %s5 = inlined_call_operand.hbm [shape: f32[16,128], index: 5, kind: output, shape index: {}]
  %s6 = sld [smem:[#allocation0]]
  $region65: #{residual_block.1} parent=0
    _
  %s8 = ssub.s32 1, %s6
  %s9 = scalar_select 0, %s8, %s6
  $region1: #{residual_block.1} parent=0
    #allocation3 [shape = 'u8[8192]{0}', space=vmem, size = 0x2000, scoped, tag = 'input window, operand 0']
    #allocation4 [shape = 's32[2]{0}', space=sflag, size = 0x8, scoped, tag = 'scoped memory for residual_block.1']
    #allocation5 [shape = 's32[2]{0}', space=sflag, size = 0x8, scoped, tag = 'scoped memory for residual_block.1']
    #allocation6 [shape = 'u8[32768]{0}', space=vmem, size = 0x8000, scoped, tag = 'input window, operand 1, single buffered']
    #allocation7 [shape = 's32[1]{0}', space=sflag, size = 0x4, scoped, tag = 'scoped memory for residual_block.1']
    #allocation8 [shape = 'u8[32768]{0}', space=vmem, size = 0x8000, scoped, tag = 'input window, operand 3, single buffered']
    #allocation9 [shape = 'u8[8192]{0}', space=vmem, size = 0x2000, scoped, tag = 'output window, operand 0']
    %10 = vsyncpa [#allocation4], 0
    %s11 = scalar_lea.sflag [#allocation4], 1
    %12 = vsyncpa %s11, 0
    %13 = vsyncpa [#allocation7], 0
    %14 = vsyncpa [#allocation5], 0
    %s15 = scalar_lea.sflag [#allocation5], 1
    %16 = vsyncpa %s15, 0
    loop: start=0, step=1, limit=4
    $region2: #{residual_block.1} parent=1 // loop_pre_header
      _
    $region3: #{residual_block.1} parent=1 // loop_header
      %s18 = sphi 0, %s22
      %p19 = scmp.ge.s32.totalorder %s18, 4
      %s28 = sphi 0, %s30
      %s31 = sphi 0, %s28
      %s32 = sphi 0, %s31
      %s48 = sphi 0, %s32
      %s52 = sphi 0, %s52
      %s54 = sphi 0, %s52
      %s55 = sphi 0, %s54
      %s69 = sphi 0, %s55
      %s73 = sphi 0, %s73
      %s75 = sphi 0, %s73
      %s76 = sphi 0, %s75
      %s90 = sphi 0, %s76
      %s94 = sphi 0, %s94
      %s96 = sphi 0, %s94
      %s97 = sphi 0, %s96
      %s111 = sphi 0, %s97
      %s115 = sphi 0, %s115
      %s117 = sphi 0, %s115
      %s118 = sphi 0, %s117
      %s132 = sphi 0, %s118
      %s138 = sphi 0, %s140
      %s141 = sphi 0, %s138
      %s142 = sphi 0, %s141
      %s158 = sphi 0, %s142
    $region4: #{residual_block.1} parent=1 // loop_header_branch
      %21 = sbr.rel (%p19) target = $region8
    $region5: #{residual_block.1} parent=1 // loop_body
      %s23 = ssub.s32 %s18, 1
      %s24 = ssub.s32 %s18, 2
      %s25 = sadd.s32 %s18, 1
      %s26 = ssub.s32 %s18, %s25
      %p27 = scmp.eq.s32.totalorder %s26, 0
      %s29 = sadd.s32 %s28, 1
      %s30 = scalar_select %p27, %s28, %s29
      %p33 = pneg %p27
      %p34 = scmp.eq.s32.totalorder %s18, 1
      %p35 = por %p33, %p34
      %p36 = scmp.ne.s32.totalorder %s28, %s31
      %p37 = scmp.eq.s32.totalorder %s18, 0
      %p38 = por %p36, %p37
      %p39 = scmp.ne.s32.totalorder %s28, %s31
      %p40 = scmp.eq.s32.totalorder %s23, 1
      %p41 = por %p39, %p40
      %p42 = scmp.ne.s32.totalorder %s31, %s32
      %p43 = scmp.eq.s32.totalorder %s23, 0
      %p44 = por %p42, %p43
      %p45 = scmp.ne.s32.totalorder %s31, %s32
      %p46 = scmp.eq.s32.totalorder %s24, 1
      %p47 = por %p45, %p46
      %p49 = scmp.ne.s32.totalorder %s32, %s48
      %p50 = scmp.eq.s32.totalorder %s24, 0
      %p51 = por %p49, %p50
      %s53 = sadd.s32 %s52, 1
      %p56 = scmp.eq.s32.totalorder %s18, 1
      %p57 = scmp.ne.s32.totalorder %s52, %s54
      %p58 = scmp.eq.s32.totalorder %s18, 0
      %p59 = por %p57, %p58
      %p60 = scmp.ne.s32.totalorder %s52, %s54
      %p61 = scmp.eq.s32.totalorder %s23, 1
      %p62 = por %p60, %p61
      %p63 = scmp.ne.s32.totalorder %s54, %s55
      %p64 = scmp.eq.s32.totalorder %s23, 0
      %p65 = por %p63, %p64
      %p66 = scmp.ne.s32.totalorder %s54, %s55
      %p67 = scmp.eq.s32.totalorder %s24, 1
      %p68 = por %p66, %p67
      %p70 = scmp.ne.s32.totalorder %s55, %s69
      %p71 = scmp.eq.s32.totalorder %s24, 0
      %p72 = por %p70, %p71
      %s74 = sadd.s32 %s73, 1
      %p77 = scmp.eq.s32.totalorder %s18, 1
      %p78 = scmp.ne.s32.totalorder %s73, %s75
      %p79 = scmp.eq.s32.totalorder %s18, 0
      %p80 = por %p78, %p79
      %p81 = scmp.ne.s32.totalorder %s73, %s75
      %p82 = scmp.eq.s32.totalorder %s23, 1
      %p83 = por %p81, %p82
      %p84 = scmp.ne.s32.totalorder %s75, %s76
      %p85 = scmp.eq.s32.totalorder %s23, 0
      %p86 = por %p84, %p85
      %p87 = scmp.ne.s32.totalorder %s75, %s76
      %p88 = scmp.eq.s32.totalorder %s24, 1
      %p89 = por %p87, %p88
      %p91 = scmp.ne.s32.totalorder %s76, %s90
      %p92 = scmp.eq.s32.totalorder %s24, 0
      %p93 = por %p91, %p92
      %s95 = sadd.s32 %s94, 1
      %p98 = scmp.eq.s32.totalorder %s18, 1
      %p99 = scmp.ne.s32.totalorder %s94, %s96
      %p100 = scmp.eq.s32.totalorder %s18, 0
      %p101 = por %p99, %p100
      %p102 = scmp.ne.s32.totalorder %s94, %s96
      %p103 = scmp.eq.s32.totalorder %s23, 1
      %p104 = por %p102, %p103
      %p105 = scmp.ne.s32.totalorder %s96, %s97
      %p106 = scmp.eq.s32.totalorder %s23, 0
      %p107 = por %p105, %p106
      %p108 = scmp.ne.s32.totalorder %s96, %s97
      %p109 = scmp.eq.s32.totalorder %s24, 1
      %p110 = por %p108, %p109
      %p112 = scmp.ne.s32.totalorder %s97, %s111
      %p113 = scmp.eq.s32.totalorder %s24, 0
      %p114 = por %p112, %p113
      %s116 = sadd.s32 %s115, 1
      %p119 = scmp.eq.s32.totalorder %s18, 1
      %p120 = scmp.ne.s32.totalorder %s115, %s117
      %p121 = scmp.eq.s32.totalorder %s18, 0
      %p122 = por %p120, %p121
      %p123 = scmp.ne.s32.totalorder %s115, %s117
      %p124 = scmp.eq.s32.totalorder %s23, 1
      %p125 = por %p123, %p124
      %p126 = scmp.ne.s32.totalorder %s117, %s118
      %p127 = scmp.eq.s32.totalorder %s23, 0
      %p128 = por %p126, %p127
      %p129 = scmp.ne.s32.totalorder %s117, %s118
      %p130 = scmp.eq.s32.totalorder %s24, 1
      %p131 = por %p129, %p130
      %p133 = scmp.ne.s32.totalorder %s118, %s132
      %p134 = scmp.eq.s32.totalorder %s24, 0
      %p135 = por %p133, %p134
      %s136 = ssub.s32 %s18, %s25
      %p137 = scmp.eq.s32.totalorder %s136, 0
      %s139 = sadd.s32 %s138, 1
      %s140 = scalar_select %p137, %s138, %s139
      %p143 = pneg %p137
      %p144 = scmp.eq.s32.totalorder %s18, 1
      %p145 = por %p143, %p144
      %p146 = scmp.ne.s32.totalorder %s138, %s141
      %p147 = scmp.eq.s32.totalorder %s18, 0
      %p148 = por %p146, %p147
      %p149 = scmp.ne.s32.totalorder %s138, %s141
      %p150 = scmp.eq.s32.totalorder %s23, 1
      %p151 = por %p149, %p150
      %p152 = scmp.ne.s32.totalorder %s141, %s142
      %p153 = scmp.eq.s32.totalorder %s23, 0
      %p154 = por %p152, %p153
      %p155 = scmp.ne.s32.totalorder %s141, %s142
      %p156 = scmp.eq.s32.totalorder %s24, 1
      %p157 = por %p155, %p156
      %p159 = scmp.ne.s32.totalorder %s142, %s158
      %p160 = scmp.eq.s32.totalorder %s24, 0
      %p161 = por %p159, %p160
      %p162 = scmp.le.s32.totalorder 1, %s18
      %p163 = scmp.lt.s32.totalorder %s18, 3
      %p164 = pnand %p162, %p163
      %p165 = pneg %p164
      // Predicated region
      $region9: #{residual_block.1} parent=5 // pred_check
        _
      $region10: #{residual_block.1} parent=5 // pred_check_branch
        %167 = sbr.rel (%p164) target = $region12
      $region11: #{residual_block.1} parent=5 // pred_region
        %s168 = ssub.s32 %s18, 1
        // Predicated region
        $region13: #{residual_block.1} parent=11 // pred_check
          %p169 = pneg %p65
        $region14: #{residual_block.1} parent=11 // pred_check_branch
          %171 = sbr.rel (%p169) target = $region16
        $region15: #{residual_block.1} parent=11 // pred_region
          %173 = vsyncadd [#allocation7], 0
          %s174 = sshll.u32 %s1, 4
          %s175 = int_to_ptr.hbm [resolvable:$true] %s174
          %s176 = sshll.u32 [#allocation6], 4
          %s177 = int_to_ptr.vmem [resolvable:$true] %s176
          %182 = dma.hbm_to_vmem [thread:$0]  %s175, 1024, %s177, [#allocation7], 64, 64, 4
        $region16: #{residual_block.1} parent=11 // pred_fallthru
          _
        // Predicated region
        $region17: #{residual_block.1} parent=11 // pred_check
          %p183 = pneg %p86
        $region18: #{residual_block.1} parent=11 // pred_check_branch
          %185 = sbr.rel (%p183) target = $region20
        $region19: #{residual_block.1} parent=11 // pred_region
          _
        $region20: #{residual_block.1} parent=11 // pred_fallthru
          _
        // Predicated region
        $region21: #{residual_block.1} parent=11 // pred_check
          %p186 = pneg %p107
        $region22: #{residual_block.1} parent=11 // pred_check_branch
          %188 = sbr.rel (%p186) target = $region24
        $region23: #{residual_block.1} parent=11 // pred_region
          %190 = vsyncadd [#allocation7], 0
          %s191 = sshll.u32 %s3, 4
          %s192 = int_to_ptr.hbm [resolvable:$true] %s191
          %s193 = sshll.u32 [#allocation8], 4
          %s194 = int_to_ptr.vmem [resolvable:$true] %s193
          %199 = dma.hbm_to_vmem [thread:$0]  %s192, 1024, %s194, [#allocation7], 64, 64, 4
        $region24: #{residual_block.1} parent=11 // pred_fallthru
          _
        // Predicated region
        $region25: #{residual_block.1} parent=11 // pred_check
          %p200 = pneg %p128
        $region26: #{residual_block.1} parent=11 // pred_check_branch
          %202 = sbr.rel (%p200) target = $region28
        $region27: #{residual_block.1} parent=11 // pred_region
          _
        $region28: #{residual_block.1} parent=11 // pred_fallthru
          _
      $region12: #{residual_block.1} parent=5 // pred_fallthru
        _
      %p203 = scmp.lt.s32.totalorder %s18, 2
      // Predicated region
      $region29: #{residual_block.1} parent=5 // pred_check
        %p204 = pneg %p203
      $region30: #{residual_block.1} parent=5 // pred_check_branch
        %206 = sbr.rel (%p204) target = $region32
      $region31: #{residual_block.1} parent=5 // pred_region
        // Predicated region
        $region33: #{residual_block.1} parent=31 // pred_check
          %p207 = pneg %p38
        $region34: #{residual_block.1} parent=31 // pred_check_branch
          %209 = sbr.rel (%p207) target = $region36
        $region35: #{residual_block.1} parent=31 // pred_region
          %s210 = sand.u32 %s28, 1
          %s211 = scalar_lea.sflag [#allocation4], %s210
          %s212 = sand.u32 %s28, 1
          %s213 = smul.addr %s212, 8
          %s214 = scalar_lea.vmem [#allocation3], %s213
          %216 = vsyncadd %s211, 0
          %s217 = smul.addr %s18, 8
          %s218 = scalar_lea.hbm %s0, %s217
          %s220 = sshll.u32 %s218, 4
          %s221 = int_to_ptr.hbm [resolvable:$true] %s220
          %s222 = sshll.u32 %s214, 4
          %s223 = int_to_ptr.vmem [resolvable:$true] %s222
          %225 = dma.hbm_to_vmem [thread:$0]  %s221, 128, %s223, %s211
        $region36: #{residual_block.1} parent=31 // pred_fallthru
          _
      $region32: #{residual_block.1} parent=5 // pred_fallthru
        _
      %p226 = scmp.le.s32.totalorder 1, %s18
      %p227 = scmp.lt.s32.totalorder %s18, 3
      %p228 = pnand %p226, %p227
      %p229 = pneg %p228
      // Predicated region
      $region37: #{residual_block.1} parent=5 // pred_check
        _
      $region38: #{residual_block.1} parent=5 // pred_check_branch
        %231 = sbr.rel (%p228) target = $region40
      $region39: #{residual_block.1} parent=5 // pred_region
        %s232 = ssub.s32 %s18, 1
        %s233 = sand.u32 %s31, 1
        %s234 = scalar_lea.sflag [#allocation4], %s233
        %s235 = sand.u32 %s31, 1
        %s236 = smul.addr %s235, 8
        %s237 = scalar_lea.vmem [#allocation3], %s236
        // Predicated region
        $region41: #{residual_block.1} parent=39 // pred_check
          %p238 = pneg %p44
        $region42: #{residual_block.1} parent=39 // pred_check_branch
          %240 = sbr.rel (%p238) target = $region44
        $region43: #{residual_block.1} parent=39 // pred_region
          %242 = dma.done %s234, 128
        $region44: #{residual_block.1} parent=39 // pred_fallthru
          _
        // Predicated region
        $region45: #{residual_block.1} parent=39 // pred_check
          %p243 = pneg %p65
        $region46: #{residual_block.1} parent=39 // pred_check_branch
          %245 = sbr.rel (%p243) target = $region48
        $region47: #{residual_block.1} parent=39 // pred_region
          %247 = dma.done [#allocation7], 1024
        $region48: #{residual_block.1} parent=39 // pred_fallthru
          _
        // Predicated region
        $region49: #{residual_block.1} parent=39 // pred_check
          %p248 = pneg %p107
        $region50: #{residual_block.1} parent=39 // pred_check_branch
          %250 = sbr.rel (%p248) target = $region52
        $region51: #{residual_block.1} parent=39 // pred_region
          %252 = dma.done [#allocation7], 1024
        $region52: #{residual_block.1} parent=39 // pred_fallthru
          _
        %s253 = sand.u32 %s31, 1
        %s254 = scalar_lea.sflag [#allocation4], %s253
        %s255 = sand.u32 %s31, 1
        %s256 = smul.addr %s255, 8
        %s257 = scalar_lea.vmem [#allocation3], %s256
        %p258 = pneg %p44
        %p259 = pneg %p41
        %p260 = pneg %p65
        %p261 = pneg %p62
        %p262 = pneg %p86
        %p263 = pneg %p83
        %p264 = pneg %p107
        %p265 = pneg %p104
        %p266 = pneg %p128
        %p267 = pneg %p125
        %p268 = pneg %p154
        %p269 = pneg %p151
        %s270 = sand.u32 %s141, 1
        %s271 = scalar_lea.sflag [#allocation5], %s270
        %s272 = sand.u32 %s141, 1
        %s273 = smul.addr %s272, 8
        %s274 = scalar_lea.vmem [#allocation9], %s273
        %275 = vst [vmem:[#allocation2] sm:$0xff] 0.0
        %v276 = vld [vmem:[%s237] sm:$0xff]
        %vm277 = vcmask 261120
        %278 = vst.msk [vmem:[#allocation2] sm:$0xff] %vm277, %v276
        %v279 = vld [vmem:[#allocation2] sm:$0xff]
        %v280 = vpack.c.bf16 %v279, %v279
        %v281 = vld [vmem:[#allocation6] sm:$0xf]
        %v282 = vld [vmem:[#allocation6 + $0x4] sm:$0xf]
        %v283 = vld [vmem:[#allocation6 + $0x8] sm:$0xf]
        %v284 = vld [vmem:[#allocation6 + $0xc] sm:$0xf]
        %v285 = vld [vmem:[#allocation6 + $0x10] sm:$0xf]
        %v286 = vld [vmem:[#allocation6 + $0x14] sm:$0xf]
        %v287 = vld [vmem:[#allocation6 + $0x18] sm:$0xf]
        %v288 = vld [vmem:[#allocation6 + $0x1c] sm:$0xf]
        %v289 = vld [vmem:[#allocation6 + $0x20] sm:$0xf]
        %v290 = vld [vmem:[#allocation6 + $0x24] sm:$0xf]
        %v291 = vld [vmem:[#allocation6 + $0x28] sm:$0xf]
        %v292 = vld [vmem:[#allocation6 + $0x2c] sm:$0xf]
        %v293 = vld [vmem:[#allocation6 + $0x30] sm:$0xf]
        %v294 = vld [vmem:[#allocation6 + $0x34] sm:$0xf]
        %v295 = vld [vmem:[#allocation6 + $0x38] sm:$0xf]
        %v296 = vld [vmem:[#allocation6 + $0x3c] sm:$0xf]
        %v297 = vld [vmem:[%s2] sm:$0x1]
        %v299 = vperm.slane %v297, 0
        %v317 = vunpack.c.l.b16 %v281
        %v318 = vunpack.c.l.b16 %v282
        %v319 = vunpack.c.l.b16 %v283
        %v320 = vunpack.c.l.b16 %v284
        %v321 = vunpack.c.l.b16 %v285
        %v322 = vunpack.c.l.b16 %v286
        %v323 = vunpack.c.l.b16 %v287
        %v324 = vunpack.c.l.b16 %v288
        %v325 = vunpack.c.l.b16 %v289
        %v326 = vunpack.c.l.b16 %v290
        %v327 = vunpack.c.l.b16 %v291
        %v328 = vunpack.c.l.b16 %v292
        %v329 = vunpack.c.l.b16 %v293
        %v330 = vunpack.c.l.b16 %v294
        %v331 = vunpack.c.l.b16 %v295
        %v332 = vunpack.c.l.b16 %v296
        %v333 = vpack.c.b16 %v318, %v317
        %v334 = vpack.c.b16 %v320, %v319
        %v335 = vpack.c.b16 %v322, %v321
        %v336 = vpack.c.b16 %v324, %v323
        %v337 = vpack.c.b16 %v326, %v325
        %v338 = vpack.c.b16 %v328, %v327
        %v339 = vpack.c.b16 %v330, %v329
        %v340 = vpack.c.b16 %v332, %v331
        %349 = vmatpush.bf16.msra.mxu0 %v340
        %350 = vmatpush.bf16.msra.mxu0 %v339
        %351 = vmatpush.bf16.msra.mxu0 %v338
        %352 = vmatpush.bf16.msra.mxu0 %v337
        %353 = vmatpush.bf16.msra.mxu0 %v336
        %354 = vmatpush.bf16.msra.mxu0 %v335
        %355 = vmatpush.bf16.msra.mxu0 %v334
        %356 = vmatpush.bf16.msra.mxu0 %v333
        %357 = vmatmul.bf16.gmra.mxu0 %v280
        %v358 = vpop.f32.mrf.mxu0
        %v359 = vadd.f32 %v299, %v358
        %v360 = vpop.f32.mrf.mxu0
        %361 = vdwg.mxu0
        %v362 = vtanh.pop %v359
        %v363 = vpack.c.bf16 %v362, %v362
        %v364 = vld [vmem:[#allocation8] sm:$0xf]
        %v365 = vld [vmem:[#allocation8 + $0x4] sm:$0xf]
        %v366 = vld [vmem:[#allocation8 + $0x8] sm:$0xf]
        %v367 = vld [vmem:[#allocation8 + $0xc] sm:$0xf]
        %v368 = vld [vmem:[#allocation8 + $0x10] sm:$0xf]
        %v369 = vld [vmem:[#allocation8 + $0x14] sm:$0xf]
        %v370 = vld [vmem:[#allocation8 + $0x18] sm:$0xf]
        %v371 = vld [vmem:[#allocation8 + $0x1c] sm:$0xf]
        %v372 = vld [vmem:[#allocation8 + $0x20] sm:$0xf]
        %v373 = vld [vmem:[#allocation8 + $0x24] sm:$0xf]
        %v374 = vld [vmem:[#allocation8 + $0x28] sm:$0xf]
        %v375 = vld [vmem:[#allocation8 + $0x2c] sm:$0xf]
        %v376 = vld [vmem:[#allocation8 + $0x30] sm:$0xf]
        %v377 = vld [vmem:[#allocation8 + $0x34] sm:$0xf]
        %v378 = vld [vmem:[#allocation8 + $0x38] sm:$0xf]
        %v379 = vld [vmem:[#allocation8 + $0x3c] sm:$0xf]
        %v380 = vld [vmem:[%s4] sm:$0x1]
        %v382 = vperm.slane %v380, 0
        %v400 = vunpack.c.l.b16 %v364
        %v401 = vunpack.c.l.b16 %v365
        %v402 = vunpack.c.l.b16 %v366
        %v403 = vunpack.c.l.b16 %v367
        %v404 = vunpack.c.l.b16 %v368
        %v405 = vunpack.c.l.b16 %v369
        %v406 = vunpack.c.l.b16 %v370
        %v407 = vunpack.c.l.b16 %v371
        %v408 = vunpack.c.l.b16 %v372
        %v409 = vunpack.c.l.b16 %v373
        %v410 = vunpack.c.l.b16 %v374
        %v411 = vunpack.c.l.b16 %v375
        %v412 = vunpack.c.l.b16 %v376
        %v413 = vunpack.c.l.b16 %v377
        %v414 = vunpack.c.l.b16 %v378
        %v415 = vunpack.c.l.b16 %v379
        %v416 = vpack.c.b16 %v401, %v400
        %v417 = vpack.c.b16 %v403, %v402
        %v418 = vpack.c.b16 %v405, %v404
        %v419 = vpack.c.b16 %v407, %v406
        %v420 = vpack.c.b16 %v409, %v408
        %v421 = vpack.c.b16 %v411, %v410
        %v422 = vpack.c.b16 %v413, %v412
        %v423 = vpack.c.b16 %v415, %v414
        %432 = vmatpush.bf16.msra.mxu0 %v423
        %433 = vmatpush.bf16.msra.mxu0 %v422
        %434 = vmatpush.bf16.msra.mxu0 %v421
        %435 = vmatpush.bf16.msra.mxu0 %v420
        %436 = vmatpush.bf16.msra.mxu0 %v419
        %437 = vmatpush.bf16.msra.mxu0 %v418
        %438 = vmatpush.bf16.msra.mxu0 %v417
        %439 = vmatpush.bf16.msra.mxu0 %v416
        %440 = vmatmul.bf16.gmra.mxu0 %v363
        %v441 = vpop.f32.mrf.mxu0
        %v442 = vadd.f32 %v382, %v441
        %v443 = vpop.f32.mrf.mxu0
        %444 = vdwg.mxu0
        %v445 = vadd.f32 %v442, %v279
        %v446 = vtanh.pop %v445
        %447 = vst [vmem:[%s274] sm:$0xff] %v446
        %s448 = sand.u32 %s141, 1
        %s449 = scalar_lea.sflag [#allocation5], %s448
        %s450 = sand.u32 %s141, 1
        %s451 = smul.addr %s450, 8
        %s452 = scalar_lea.vmem [#allocation9], %s451
        // Predicated region
        $region53: #{residual_block.1} parent=39 // pred_check
          %p453 = pneg %p151
        $region54: #{residual_block.1} parent=39 // pred_check_branch
          %455 = sbr.rel (%p453) target = $region56
        $region55: #{residual_block.1} parent=39 // pred_region
          %457 = vsyncadd %s449, 0
          %s458 = smul.addr %s23, 8
          %s459 = scalar_lea.hbm %s5, %s458
          %s461 = sshll.u32 %s452, 4
          %s462 = int_to_ptr.vmem [resolvable:$true] %s461
          %s463 = sshll.u32 %s459, 4
          %s464 = int_to_ptr.hbm [resolvable:$true] %s463
          %466 = dma.vmem_to_hbm [thread:$0]  %s462, 128, %s464, %s449
        $region56: #{residual_block.1} parent=39 // pred_fallthru
          _
      $region40: #{residual_block.1} parent=5 // pred_fallthru
        _
      %p467 = scmp.le.s32.totalorder 2, %s18
      // Predicated region
      $region57: #{residual_block.1} parent=5 // pred_check
        %p468 = pneg %p467
      $region58: #{residual_block.1} parent=5 // pred_check_branch
        %470 = sbr.rel (%p468) target = $region60
      $region59: #{residual_block.1} parent=5 // pred_region
        %s471 = ssub.s32 %s18, 2
        // Predicated region
        $region61: #{residual_block.1} parent=59 // pred_check
          %p472 = pneg %p157
        $region62: #{residual_block.1} parent=59 // pred_check_branch
          %474 = sbr.rel (%p472) target = $region64
        $region63: #{residual_block.1} parent=59 // pred_region
          %s475 = sand.u32 %s142, 1
          %s476 = scalar_lea.sflag [#allocation5], %s475
          %s477 = sand.u32 %s142, 1
          %s478 = smul.addr %s477, 8
          %s479 = scalar_lea.vmem [#allocation9], %s478
          %481 = dma.done %s476, 128
        $region64: #{residual_block.1} parent=59 // pred_fallthru
          _
      $region60: #{residual_block.1} parent=5 // pred_fallthru
        _
    $region6: #{residual_block.1} parent=1 // loop_footer
      %s22 = sadd.s32 1, %s18
    $region7: #{residual_block.1} parent=1 // loop_footer_branch
      %17 = sbr.rel target = $region3
    $region8: #{residual_block.1} parent=1 // loop_exit
      _
    %482 = vsyncpa [#allocation4], 1
    %s483 = scalar_lea.sflag [#allocation4], 1
    %484 = vsyncpa %s483, 1
    %485 = vsyncpa [#allocation7], 1
    %486 = vsyncpa [#allocation5], 1
    %s487 = scalar_lea.sflag [#allocation5], 1
    %488 = vsyncpa %s487, 1

</llo_original>
